<compile_context>
chip_gen: v5e
topology: v5e:2x2
jax: 0.10.0
libtpu: 0.0.40
codegen_flags: <defaults>
</compile_context>

<pallas_src>
import math

import jax
import jax.numpy as jnp
from jax.experimental import pallas as pl
from jax.experimental.pallas import tpu as pltpu

_LANE = 128
_SUBLANE = 8
_PAD_LOGIT = -1e30  # tanh(|pad|/2)=1 -> log term 0; sigmoid(pad)=0; target pad 0


def _cdiv(a, b):
    return -(-a // b)


def _round_up(v, m):
    return _cdiv(v, m) * m


def _tensorcores_per_chip():
    """Best-effort TensorCores-per-chip detection (2 on v7x, else 1)."""
    try:
        kind = str(getattr(jax.devices()[0], "device_kind", "")).lower()
    except Exception:
        return 1
    if "v7" in kind or "7x" in kind:
        return 2
    return 1


def _bce_dice_stats_kernel(x_ref, t_ref, bce_ref, inter_ref, sig_ref, tgt_ref):
    """Accumulate per-sample sufficient statistics for BCE + Dice.

    x_ref, t_ref: (N, tile_rows, 128) blocks of logits / targets.
    Outputs are lane-dense (1, N, 128) per-split partials that stay resident in
    VMEM across the inner (reduction) grid axis:
      bce_ref   : partial sums of the elementwise BCE-with-logits integrand
      inter_ref : partial sums of sigmoid(x) * t
      sig_ref   : partial sums of sigmoid(x)
      tgt_ref   : partial sums of t
    """
    @pl.when(pl.program_id(1) == 0)
    def _init():
        bce_ref[...] = jnp.zeros_like(bce_ref)
        inter_ref[...] = jnp.zeros_like(inter_ref)
        sig_ref[...] = jnp.zeros_like(sig_ref)
        tgt_ref[...] = jnp.zeros_like(tgt_ref)

    x = x_ref[...].astype(jnp.float32)              # (N, tile_rows, 128)
    t = t_ref[...].astype(jnp.float32)

    # sigmoid / stable BCE via the tanh identity: 2 EUP ops, no divide.
    s_abs = 0.5 + 0.5 * jnp.tanh(0.5 * jnp.abs(x))  # sigmoid(|x|)
    bce_elem = jnp.maximum(x, 0.0) - x * t - jnp.log(s_abs)
    s = jnp.where(x >= 0.0, s_abs, 1.0 - s_abs)     # sigmoid(x)

    # Reduce only over the tile-rows (sublane) axis; the 128-lane reduce is
    # deferred to the tiny JAX epilogue.
    bce_ref[...] += jnp.sum(bce_elem, axis=1)[None]
    inter_ref[...] += jnp.sum(s * t, axis=1)[None]
    sig_ref[...] += jnp.sum(s, axis=1)[None]
    tgt_ref[...] += jnp.sum(t, axis=1)[None]


def bce_dice_loss(log_ratio, x, target, *, smooth=1e-5,
                  max_block_bytes=4 << 20, num_splits=None,
                  core_parallel=None, cast_targets_to_bf16=True):
    """Pallas TPU implementation of BCEDiceLoss.forward.

    x, target: NCHW (any trailing shape); log_ratio: 1-element parameter.
    Returns a scalar float32 loss.
    """
    n = x.shape[0]
    d = math.prod(x.shape[1:])

    x2 = x.reshape(n, d)
    # Stream targets as bf16 (0/1 is exact in bf16) -> -25% HBM vs f32/f32.
    # TODO(synk): keep f32 targets if soft (non-binary) labels are ever used.
    t_dtype = jnp.bfloat16 if cast_targets_to_bf16 else jnp.float32
    t2 = target.reshape(n, d).astype(t_dtype)

    # ---- lane/sublane-dense tiling over the feature axis -------------------
    rows = _round_up(_cdiv(d, _LANE), _SUBLANE)        # rows of 128 lanes

    if num_splits is None:
        cores = _tensorcores_per_chip()                # 1 on v5e/v6e, 2 on v7x
        num_splits = cores if rows >= cores * _SUBLANE else 1
        if core_parallel is None:
            core_parallel = num_splits > 1
    if core_parallel is None:
        core_parallel = False

    per_split = _round_up(_cdiv(rows, num_splits), _SUBLANE)

    # Balanced tiles: pick the number of tiles from the VMEM cap, then spread
    # rows evenly so padding is bounded to < 8 rows per tile.
    bytes_per_row = n * _LANE * x2.dtype.itemsize
    cap_rows = max(_SUBLANE,
                   (max_block_bytes // bytes_per_row) // _SUBLANE * _SUBLANE)
    tiles_per_split = max(1, _cdiv(per_split, cap_rows))
    tile_rows = _round_up(_cdiv(per_split, tiles_per_split), _SUBLANE)
    per_split = tiles_per_split * tile_rows
    rows_padded = per_split * num_splits
    d_padded = rows_padded * _LANE

    if d_padded != d:
        pad = d_padded - d
        # Pad logits with a huge negative value and targets with 0: every
        # statistic is exactly 0 for padded elements, so no masking is needed.
        x2 = jnp.pad(x2, ((0, 0), (0, pad)), constant_values=_PAD_LOGIT)
        t2 = jnp.pad(t2, ((0, 0), (0, pad)))

    x3 = x2.reshape(n, rows_padded, _LANE)
    t3 = t2.reshape(n, rows_padded, _LANE)

    def in_map(s_idx, k_idx):
        return (0, s_idx * tiles_per_split + k_idx, 0)

    def out_map(s_idx, k_idx):
        return (s_idx, 0, 0)

    lead_sem = pltpu.CORE_PARALLEL if core_parallel else pltpu.ARBITRARY

    out_sds = jax.ShapeDtypeStruct((num_splits, n, _LANE), jnp.float32)
    out_spec = pl.BlockSpec((1, n, _LANE), out_map)

    bce_p, inter_p, sig_p, tgt_p = pl.pallas_call(
        _bce_dice_stats_kernel,
        out_shape=(out_sds, out_sds, out_sds, out_sds),
        grid_spec=pltpu.PrefetchScalarGridSpec(
            num_scalar_prefetch=0,
            grid=(num_splits, tiles_per_split),
            in_specs=[
                pl.BlockSpec((n, tile_rows, _LANE), in_map),   # logits
                pl.BlockSpec((n, tile_rows, _LANE), in_map),   # targets
            ],
            out_specs=[out_spec, out_spec, out_spec, out_spec],
        ),
        compiler_params=pltpu.CompilerParams(
            dimension_semantics=(lead_sem, pltpu.ARBITRARY),
            vmem_limit_bytes=32 * 1024 * 1024),
    )(x3, t3)

    # ---- tiny scalar epilogue in plain JAX ----------------------------------
    bce_mean = jnp.sum(bce_p) / float(n * d)           # mean over true elems
    inter = jnp.sum(inter_p, axis=(0, 2))              # (N,)
    sig = jnp.sum(sig_p, axis=(0, 2))
    tgt = jnp.sum(tgt_p, axis=(0, 2))
    dice = (2.0 * inter + smooth) / (sig + tgt + smooth)
    dice_loss = 1.0 - jnp.mean(dice)
    bce_w = jax.nn.sigmoid(jnp.asarray(log_ratio, jnp.float32).reshape(()))
    return bce_w * bce_mean + (1.0 - bce_w) * dice_loss


def _reference_loss(log_ratio, x, target, smooth=1e-5):
    """Plain-JAX reference matching the PyTorch forward exactly."""
    x = x.astype(jnp.float32)
    t = target.astype(jnp.float32)
    bce = jnp.mean(jnp.maximum(x, 0.0) - x * t + jnp.log1p(jnp.exp(-jnp.abs(x))))
    n = x.shape[0]
    s = jax.nn.sigmoid(x).reshape(n, -1)
    tf = t.reshape(n, -1)
    inter = jnp.sum(s * tf, axis=1)
    denom = jnp.sum(s, axis=1) + jnp.sum(tf, axis=1)
    dice = (2.0 * inter + smooth) / (denom + smooth)
    dice_loss = 1.0 - jnp.mean(dice)
    bce_w = jax.nn.sigmoid(jnp.asarray(log_ratio, jnp.float32).reshape(()))
    return bce_w * bce + (1.0 - bce_w) * dice_loss


if __name__ == "__main__":
    base_key = jax.random.PRNGKey(0)

    def _check(test_idx, shape, **kw):
        k_x, k_t = jax.random.split(jax.random.fold_in(base_key, test_idx))
        logits = jax.random.normal(k_x, shape, dtype=jnp.float32)
        target = (jax.random.uniform(k_t, shape) > 0.5).astype(jnp.float32)
        log_ratio = jnp.array([0.0], dtype=jnp.float32)  # nn.Parameter([0.0])
        loss = jax.block_until_ready(
            bce_dice_loss(log_ratio, logits, target, **kw))
        ref = _reference_loss(log_ratio, logits, target)
        assert jnp.allclose(loss, ref, rtol=1e-5, atol=1e-5), (shape, loss, ref)

    # Primary small shape (N, C, H, W) = (2, 4, 16, 16): single block.
    _check(0, (2, 4, 16, 16))
    # Exercise the 2-split + multi-step accumulation path (explicit split,
    # conservative serial semantics so it is valid on any chip generation).
    _check(1, (2, 4, 32, 32), max_block_bytes=8 * 1024, num_splits=2)
    # Exercise the pad-to-lane-multiple path (D = 3*15*15 = 675).
    _check(2, (2, 3, 15, 15))

    print("KERNEL_OK")
</pallas_src>

<mosaic_0001>
module attributes {stable_mosaic.version = 11 : i64} {
  func.func @_bce_dice_stats_kernel(%arg0: i32, %arg1: i32, %arg2: memref<2x8x128xf32, #tpu.memory_space<vmem>>, %arg3: memref<2x8x128xbf16, #tpu.memory_space<vmem>>, %arg4: memref<1x2x128xf32, #tpu.memory_space<vmem>>, %arg5: memref<1x2x128xf32, #tpu.memory_space<vmem>>, %arg6: memref<1x2x128xf32, #tpu.memory_space<vmem>>, %arg7: memref<1x2x128xf32, #tpu.memory_space<vmem>>) attributes {dimension_semantics = [#tpu.dimension_semantics<arbitrary>, #tpu.dimension_semantics<arbitrary>], iteration_bounds = array<i64: 1, 1>, scalar_prefetch = 0 : i64, scratch_operands = 0 : i64, tpu.core_type = #tpu.core_type<tc>, window_params = [{transform_indices = @transform_0, window_bounds = array<i64: 2, 8, 128>}, {transform_indices = @transform_1, window_bounds = array<i64: 2, 8, 128>}, {transform_indices = @transform_2, window_bounds = array<i64: 1, 2, 128>}, {transform_indices = @transform_3, window_bounds = array<i64: 1, 2, 128>}, {transform_indices = @transform_4, window_bounds = array<i64: 1, 2, 128>}, {transform_indices = @transform_5, window_bounds = array<i64: 1, 2, 128>}]} {
    %c0_i32 = arith.constant 0 : i32
    %0 = arith.cmpi eq, %arg1, %c0_i32 : i32
    %1 = arith.extui %0 : i1 to i32
    %c0_i32_0 = arith.constant 0 : i32
    %2 = arith.cmpi ne, %1, %c0_i32_0 : i32
    scf.if %2 {
      %cst_39 = arith.constant 0.000000e+00 : f32
      %46 = vector.broadcast %cst_39 : f32 to vector<1x2x128xf32>
      %c0_40 = arith.constant 0 : index
      %c0_41 = arith.constant 0 : index
      %c0_42 = arith.constant 0 : index
      %47 = vector.load %arg4[%c0_40, %c0_41, %c0_42] : memref<1x2x128xf32, #tpu.memory_space<vmem>>, vector<1x2x128xf32>
      tpu.vector_store %arg4[%c0_40, %c0_41, %c0_42], %46 {strides = array<i32>} : memref<1x2x128xf32, #tpu.memory_space<vmem>>, vector<1x2x128xf32>,
      %cst_43 = arith.constant 0.000000e+00 : f32
      %48 = vector.broadcast %cst_43 : f32 to vector<1x2x128xf32>
      %c0_44 = arith.constant 0 : index
      %c0_45 = arith.constant 0 : index
      %c0_46 = arith.constant 0 : index
      %49 = vector.load %arg5[%c0_44, %c0_45, %c0_46] : memref<1x2x128xf32, #tpu.memory_space<vmem>>, vector<1x2x128xf32>
      tpu.vector_store %arg5[%c0_44, %c0_45, %c0_46], %48 {strides = array<i32>} : memref<1x2x128xf32, #tpu.memory_space<vmem>>, vector<1x2x128xf32>,
      %cst_47 = arith.constant 0.000000e+00 : f32
      %50 = vector.broadcast %cst_47 : f32 to vector<1x2x128xf32>
      %c0_48 = arith.constant 0 : index
      %c0_49 = arith.constant 0 : index
      %c0_50 = arith.constant 0 : index
      %51 = vector.load %arg6[%c0_48, %c0_49, %c0_50] : memref<1x2x128xf32, #tpu.memory_space<vmem>>, vector<1x2x128xf32>
      tpu.vector_store %arg6[%c0_48, %c0_49, %c0_50], %50 {strides = array<i32>} : memref<1x2x128xf32, #tpu.memory_space<vmem>>, vector<1x2x128xf32>,
      %cst_51 = arith.constant 0.000000e+00 : f32
      %52 = vector.broadcast %cst_51 : f32 to vector<1x2x128xf32>
      %c0_52 = arith.constant 0 : index
      %c0_53 = arith.constant 0 : index
      %c0_54 = arith.constant 0 : index
      %53 = vector.load %arg7[%c0_52, %c0_53, %c0_54] : memref<1x2x128xf32, #tpu.memory_space<vmem>>, vector<1x2x128xf32>
      tpu.vector_store %arg7[%c0_52, %c0_53, %c0_54], %52 {strides = array<i32>} : memref<1x2x128xf32, #tpu.memory_space<vmem>>, vector<1x2x128xf32>,
    } else {
    }
    %c0 = arith.constant 0 : index
    %c0_1 = arith.constant 0 : index
    %c0_2 = arith.constant 0 : index
    %3 = vector.load %arg2[%c0, %c0_1, %c0_2] : memref<2x8x128xf32, #tpu.memory_space<vmem>>, vector<2x8x128xf32>
    %c0_3 = arith.constant 0 : index
    %c0_4 = arith.constant 0 : index
    %c0_5 = arith.constant 0 : index
    %4 = vector.load %arg3[%c0_3, %c0_4, %c0_5] : memref<2x8x128xbf16, #tpu.memory_space<vmem>>, vector<2x8x128xbf16>
    %5 = arith.extf %4 : vector<2x8x128xbf16> to vector<2x8x128xf32>
    %6 = math.absf %3 : vector<2x8x128xf32>
    %cst = arith.constant 5.000000e-01 : f32
    %7 = vector.broadcast %cst : f32 to vector<2x8x128xf32>
    %8 = arith.mulf %7, %6 : vector<2x8x128xf32>
    %9 = math.tanh %8 : vector<2x8x128xf32>
    %cst_6 = arith.constant 5.000000e-01 : f32
    %10 = vector.broadcast %cst_6 : f32 to vector<2x8x128xf32>
    %11 = arith.mulf %10, %9 : vector<2x8x128xf32>
    %cst_7 = arith.constant 5.000000e-01 : f32
    %12 = vector.broadcast %cst_7 : f32 to vector<2x8x128xf32>
    %13 = arith.addf %12, %11 : vector<2x8x128xf32>
    %cst_8 = arith.constant 0.000000e+00 : f32
    %14 = vector.broadcast %cst_8 : f32 to vector<2x8x128xf32>
    %15 = arith.maximumf %3, %14 : vector<2x8x128xf32>
    %16 = arith.mulf %3, %5 : vector<2x8x128xf32>
    %17 = arith.subf %15, %16 : vector<2x8x128xf32>
    %18 = math.log %13 : vector<2x8x128xf32>
    %19 = arith.subf %17, %18 : vector<2x8x128xf32>
    %cst_9 = arith.constant 0.000000e+00 : f32
    %20 = vector.broadcast %cst_9 : f32 to vector<2x8x128xf32>
    %21 = arith.cmpf oge, %3, %20 : vector<2x8x128xf32>
    %cst_10 = arith.constant 1.000000e+00 : f32
    %22 = vector.broadcast %cst_10 : f32 to vector<2x8x128xf32>
    %23 = arith.subf %22, %13 : vector<2x8x128xf32>
    %24 = arith.select %21, %13, %23 : vector<2x8x128xi1>, vector<2x8x128xf32>
    %c0_11 = arith.constant 0 : index
    %c0_12 = arith.constant 0 : index
    %c0_13 = arith.constant 0 : index
    %25 = vector.load %arg4[%c0_11, %c0_12, %c0_13] : memref<1x2x128xf32, #tpu.memory_space<vmem>>, vector<1x2x128xf32>
    %cst_14 = arith.constant dense<0.000000e+00> : vector<2x128xf32>
    %26 = vector.multi_reduction <add>, %19, %cst_14 [1] : vector<2x8x128xf32> to vector<2x128xf32>
    %27 = vector.shape_cast %26 : vector<2x128xf32> to vector<1x2x128xf32>
    %28 = arith.addf %25, %27 : vector<1x2x128xf32>
    %c0_15 = arith.constant 0 : index
    %c0_16 = arith.constant 0 : index
    %c0_17 = arith.constant 0 : index
    %29 = vector.load %arg4[%c0_15, %c0_16, %c0_17] : memref<1x2x128xf32, #tpu.memory_space<vmem>>, vector<1x2x128xf32>
    tpu.vector_store %arg4[%c0_15, %c0_16, %c0_17], %28 {strides = array<i32>} : memref<1x2x128xf32, #tpu.memory_space<vmem>>, vector<1x2x128xf32>,
    %c0_18 = arith.constant 0 : index
    %c0_19 = arith.constant 0 : index
    %c0_20 = arith.constant 0 : index
    %30 = vector.load %arg5[%c0_18, %c0_19, %c0_20] : memref<1x2x128xf32, #tpu.memory_space<vmem>>, vector<1x2x128xf32>
    %31 = arith.mulf %24, %5 : vector<2x8x128xf32>
    %cst_21 = arith.constant dense<0.000000e+00> : vector<2x128xf32>
    %32 = vector.multi_reduction <add>, %31, %cst_21 [1] : vector<2x8x128xf32> to vector<2x128xf32>
    %33 = vector.shape_cast %32 : vector<2x128xf32> to vector<1x2x128xf32>
    %34 = arith.addf %30, %33 : vector<1x2x128xf32>
    %c0_22 = arith.constant 0 : index
    %c0_23 = arith.constant 0 : index
    %c0_24 = arith.constant 0 : index
    %35 = vector.load %arg5[%c0_22, %c0_23, %c0_24] : memref<1x2x128xf32, #tpu.memory_space<vmem>>, vector<1x2x128xf32>
    tpu.vector_store %arg5[%c0_22, %c0_23, %c0_24], %34 {strides = array<i32>} : memref<1x2x128xf32, #tpu.memory_space<vmem>>, vector<1x2x128xf32>,
    %c0_25 = arith.constant 0 : index
    %c0_26 = arith.constant 0 : index
    %c0_27 = arith.constant 0 : index
    %36 = vector.load %arg6[%c0_25, %c0_26, %c0_27] : memref<1x2x128xf32, #tpu.memory_space<vmem>>, vector<1x2x128xf32>
    %cst_28 = arith.constant dense<0.000000e+00> : vector<2x128xf32>
    %37 = vector.multi_reduction <add>, %24, %cst_28 [1] : vector<2x8x128xf32> to vector<2x128xf32>
    %38 = vector.shape_cast %37 : vector<2x128xf32> to vector<1x2x128xf32>
    %39 = arith.addf %36, %38 : vector<1x2x128xf32>
    %c0_29 = arith.constant 0 : index
    %c0_30 = arith.constant 0 : index
    %c0_31 = arith.constant 0 : index
    %40 = vector.load %arg6[%c0_29, %c0_30, %c0_31] : memref<1x2x128xf32, #tpu.memory_space<vmem>>, vector<1x2x128xf32>
    tpu.vector_store %arg6[%c0_29, %c0_30, %c0_31], %39 {strides = array<i32>} : memref<1x2x128xf32, #tpu.memory_space<vmem>>, vector<1x2x128xf32>,
    %c0_32 = arith.constant 0 : index
    %c0_33 = arith.constant 0 : index
    %c0_34 = arith.constant 0 : index
    %41 = vector.load %arg7[%c0_32, %c0_33, %c0_34] : memref<1x2x128xf32, #tpu.memory_space<vmem>>, vector<1x2x128xf32>
    %cst_35 = arith.constant dense<0.000000e+00> : vector<2x128xf32>
    %42 = vector.multi_reduction <add>, %5, %cst_35 [1] : vector<2x8x128xf32> to vector<2x128xf32>
    %43 = vector.shape_cast %42 : vector<2x128xf32> to vector<1x2x128xf32>
    %44 = arith.addf %41, %43 : vector<1x2x128xf32>
    %c0_36 = arith.constant 0 : index
    %c0_37 = arith.constant 0 : index
    %c0_38 = arith.constant 0 : index
    %45 = vector.load %arg7[%c0_36, %c0_37, %c0_38] : memref<1x2x128xf32, #tpu.memory_space<vmem>>, vector<1x2x128xf32>
    tpu.vector_store %arg7[%c0_36, %c0_37, %c0_38], %44 {strides = array<i32>} : memref<1x2x128xf32, #tpu.memory_space<vmem>>, vector<1x2x128xf32>,
    return
  }
  func.func @transform_0(%arg0: i32, %arg1: i32) -> (i32, i32, i32) {
    %c1_i32 = arith.constant 1 : i32
    %0 = arith.muli %arg0, %c1_i32 : i32
    %1 = arith.addi %0, %arg1 : i32
    %c0_i32 = arith.constant 0 : i32
    %c0_i32_0 = arith.constant 0 : i32
    %c0_i32_1 = arith.constant 0 : i32
    return %c0_i32, %1, %c0_i32_0 : i32, i32, i32
  }
  func.func @transform_1(%arg0: i32, %arg1: i32) -> (i32, i32, i32) {
    %c1_i32 = arith.constant 1 : i32
    %0 = arith.muli %arg0, %c1_i32 : i32
    %1 = arith.addi %0, %arg1 : i32
    %c0_i32 = arith.constant 0 : i32
    %c0_i32_0 = arith.constant 0 : i32
    %c0_i32_1 = arith.constant 0 : i32
    return %c0_i32, %1, %c0_i32_0 : i32, i32, i32
  }
  func.func @transform_2(%arg0: i32, %arg1: i32) -> (i32, i32, i32) {
    %c0_i32 = arith.constant 0 : i32
    %c0_i32_0 = arith.constant 0 : i32
    %c0_i32_1 = arith.constant 0 : i32
    return %arg0, %c0_i32, %c0_i32_0 : i32, i32, i32
  }
  func.func @transform_3(%arg0: i32, %arg1: i32) -> (i32, i32, i32) {
    %c0_i32 = arith.constant 0 : i32
    %c0_i32_0 = arith.constant 0 : i32
    %c0_i32_1 = arith.constant 0 : i32
    return %arg0, %c0_i32, %c0_i32_0 : i32, i32, i32
  }
  func.func @transform_4(%arg0: i32, %arg1: i32) -> (i32, i32, i32) {
    %c0_i32 = arith.constant 0 : i32
    %c0_i32_0 = arith.constant 0 : i32
    %c0_i32_1 = arith.constant 0 : i32
    return %arg0, %c0_i32, %c0_i32_0 : i32, i32, i32
  }
  func.func @transform_5(%arg0: i32, %arg1: i32) -> (i32, i32, i32) {
    %c0_i32 = arith.constant 0 : i32
    %c0_i32_0 = arith.constant 0 : i32
    %c0_i32_1 = arith.constant 0 : i32
    return %arg0, %c0_i32, %c0_i32_0 : i32, i32, i32
  }
}

</mosaic_0001>

<llo_original>
// kernel: tpu_custom_call.1
$region0: #{tpu_custom_call.1}
  #allocation0 [shape = 'u32[]', space=smem, size = 0x4, offset = 0x4, fixed_abs, tag = 'smem constant byte address 0x4 - core index']
  #allocation1 [shape = 'u32[72,128]{1,0:T(1,128)}', space=vmem, size = 0x9000, scoped, tag = 'internal scratch']
  %s0 = inlined_call_operand.hbm [shape: f32[2,8,128], index: 0, kind: input, shape index: {}]
  %s1 = inlined_call_operand.hbm [shape: bf16[2,8,128], index: 1, kind: input, shape index: {}]
  %s2 = inlined_call_operand.hbm [shape: f32[1,2,128], index: 2, kind: output, shape index: {0}]
  %s3 = inlined_call_operand.hbm [shape: f32[1,2,128], index: 3, kind: output, shape index: {1}]
  %s4 = inlined_call_operand.hbm [shape: f32[1,2,128], index: 4, kind: output, shape index: {2}]
  %s5 = inlined_call_operand.hbm [shape: f32[1,2,128], index: 5, kind: output, shape index: {3}]
  %6 = xla_tuple %s2, %s3, %s4, %s5
  %s7 = sld [smem:[#allocation0]]
  $region54: #{tpu_custom_call.1} parent=0
    _
  %s9 = ssub.s32 1, %s7
  %s10 = scalar_select 0, %s9, %s7
  $region1: #{tpu_custom_call.1} parent=0
    #allocation2 [shape = 'u8[8192]{0}', space=vmem, size = 0x2000, scoped, tag = 'input window, operand 0, single buffered']
    #allocation3 [shape = 's32[1]{0}', space=sflag, size = 0x4, scoped, tag = 'scoped memory for tpu_custom_call.1']
    #allocation4 [shape = 's32[1]{0}', space=sflag, size = 0x4, scoped, tag = 'scoped memory for tpu_custom_call.1']
    #allocation5 [shape = 'u8[4096]{0}', space=vmem, size = 0x1000, scoped, tag = 'input window, operand 1, single buffered']
    #allocation6 [shape = 's32[1]{0}', space=sflag, size = 0x4, scoped, tag = 'scoped memory for tpu_custom_call.1']
    #allocation7 [shape = 'u8[1024]{0}', space=vmem, size = 0x400, scoped, tag = 'output window, operand 0, single buffered']
    #allocation8 [shape = 'u8[1024]{0}', space=vmem, size = 0x400, scoped, tag = 'output window, operand 1, single buffered']
    #allocation9 [shape = 's32[1]{0}', space=sflag, size = 0x4, scoped, tag = 'scoped memory for tpu_custom_call.1']
    #allocation10 [shape = 'u8[1024]{0}', space=vmem, size = 0x400, scoped, tag = 'output window, operand 2, single buffered']
    #allocation11 [shape = 'u8[1024]{0}', space=vmem, size = 0x400, scoped, tag = 'output window, operand 3, single buffered']
    #allocation12 [shape = 's32[1]{0}', space=sflag, size = 0x4, scoped, tag = 'scoped memory for tpu_custom_call.1']
    %11 = vsyncpa [#allocation3], 0
    %12 = vsyncpa [#allocation6], 0
    %13 = vsyncpa [#allocation4], 0
    %14 = vsyncpa [#allocation9], 0
    %15 = vsyncpa [#allocation12], 0
    // Predicated region
    $region2: #{tpu_custom_call.1} parent=1 // pred_check
      _
    $region3: #{tpu_custom_call.1} parent=1 // pred_check_branch
      %17 = sbr.rel (0) target = $region5
    $region4: #{tpu_custom_call.1} parent=1 // pred_region
      %s18 = sadd.s32 0, 0
      %20 = vsyncadd [#allocation3], 0
      %s21 = smul.addr %s18, 8
      %s22 = scalar_lea.hbm %s0, %s21
      %s23 = sshll.u32 %s22, 4
      %s24 = int_to_ptr.hbm [resolvable:$true] %s23
      %s25 = sshll.u32 [#allocation2], 4
      %s26 = int_to_ptr.vmem [resolvable:$true] %s25
      %31 = dma.hbm_to_vmem [thread:$0]  %s24, 256, %s26, [#allocation3], 128, 128, 8
    $region5: #{tpu_custom_call.1} parent=1 // pred_fallthru
      _
    // Predicated region
    $region6: #{tpu_custom_call.1} parent=1 // pred_check
      _
    $region7: #{tpu_custom_call.1} parent=1 // pred_check_branch
      %33 = sbr.rel (0) target = $region9
    $region8: #{tpu_custom_call.1} parent=1 // pred_region
      %s34 = sadd.s32 0, 0
      %36 = vsyncadd [#allocation6], 0
      %s37 = smul.addr %s34, 4
      %s38 = scalar_lea.hbm %s1, %s37
      %s39 = sshll.u32 %s38, 4
      %s40 = int_to_ptr.hbm [resolvable:$true] %s39
      %s41 = sshll.u32 [#allocation5], 4
      %s42 = int_to_ptr.vmem [resolvable:$true] %s41
      %47 = dma.hbm_to_vmem [thread:$0]  %s40, 128, %s42, [#allocation6], 64, 64, 4
    $region9: #{tpu_custom_call.1} parent=1 // pred_fallthru
      _
    // Predicated region
    $region10: #{tpu_custom_call.1} parent=1 // pred_check
      _
    $region11: #{tpu_custom_call.1} parent=1 // pred_check_branch
      %49 = sbr.rel (0) target = $region13
    $region12: #{tpu_custom_call.1} parent=1 // pred_region
      %51 = dma.done [#allocation3], 256
    $region13: #{tpu_custom_call.1} parent=1 // pred_fallthru
      _
    // Predicated region
    $region14: #{tpu_custom_call.1} parent=1 // pred_check
      _
    $region15: #{tpu_custom_call.1} parent=1 // pred_check_branch
      %53 = sbr.rel (0) target = $region17
    $region16: #{tpu_custom_call.1} parent=1 // pred_region
      %55 = dma.done [#allocation6], 128
    $region17: #{tpu_custom_call.1} parent=1 // pred_fallthru
      _
    %s56 = sadd.s32 0, 0
    %s57 = sadd.s32 0, 0
    %p58 = scmp.eq.s32.totalorder 0, 0
    // Predicated region
    $region18: #{tpu_custom_call.1} parent=1 // pred_check
      %p59 = pneg %p58
    $region19: #{tpu_custom_call.1} parent=1 // pred_check_branch
      %61 = sbr.rel (%p59) target = $region21
    $region20: #{tpu_custom_call.1} parent=1 // pred_region
      %62 = vst [vmem:[#allocation7] sm:$0x3] 0.0
      %63 = vst [vmem:[#allocation8] sm:$0x3] 0.0
      %64 = vst [vmem:[#allocation10] sm:$0x3] 0.0
      %65 = vst [vmem:[#allocation11] sm:$0x3] 0.0
    $region21: #{tpu_custom_call.1} parent=1 // pred_fallthru
      _
    %v66 = vld [vmem:[#allocation2] sm:$0xff]
    %v67 = vld [vmem:[#allocation2 + $0x8] sm:$0xff]
    %v68 = vld [vmem:[#allocation5] sm:$0xf]
    %v69 = vld [vmem:[#allocation5 + $0x4] sm:$0xf]
    %v70 = vunpack.c.l.bf16 %v68
    %v71 = vunpack.c.l.bf16 %v69
    %v72 = vand.u32 2147483647, %v66
    %v73 = vand.u32 2147483647, %v67
    %v74 = vmul.f32 %v72, 0.5
    %v75 = vmul.f32 %v73, 0.5
    %v76 = vtanh.pop %v74
    %v77 = vtanh.pop %v75
    %v78 = vmul.f32 %v76, 0.5
    %v79 = vmul.f32 %v77, 0.5
    %v80 = vadd.f32 %v78, 0.5
    %v81 = vadd.f32 %v79, 0.5
    %v82 = vmax.f32 %v66, 0.0
    %v83 = vmax.f32 %v67, 0.0
    %v84 = vmul.f32 %v66, %v70
    %v85 = vmul.f32 %v67, %v71
    %v86 = vsub.f32 %v82, %v84
    %v87 = vsub.f32 %v83, %v85
    %v88 = vlog2.pop %v80
    %v89 = vmul.f32 %v88, 0.6931472
    %v90 = vlog2.pop %v81
    %v91 = vmul.f32 %v90, 0.6931472
    %v92 = vsub.f32 %v86, %v89
    %v93 = vsub.f32 %v87, %v91
    %vm94 = vcmp.ge.f32.partialorder %v66, 0.0
    %vm95 = vcmp.ge.f32.partialorder %v67, 0.0
    %v96 = vsub.f32 1.0, %v80
    %v97 = vsub.f32 1.0, %v81
    %v98 = vsel %vm94, %v80, %v96
    %v99 = vsel %vm95, %v81, %v97
    %v100 = vld [vmem:[#allocation7] sm:$0x3]
    %v101 = vrot.slane %v92, 4
    %v102 = vadd.f32 %v92, %v101
    %v103 = vrot.slane %v102, 2
    %v104 = vadd.f32 %v102, %v103
    %v105 = vrot.slane %v104, 1
    %v106 = vadd.f32 %v104, %v105
    %v107 = vrot.slane %v93, 4
    %v108 = vadd.f32 %v93, %v107
    %v109 = vrot.slane %v108, 2
    %v110 = vadd.f32 %v108, %v109
    %v111 = vrot.slane %v110, 1
    %v112 = vadd.f32 %v110, %v111
    %vm115 = vcmask 1041409
    %v116 = vsel %vm115, %v112, %v106
    %v118 = vadd.f32 %v100, %v116
    %119 = vst [vmem:[#allocation7] sm:$0x3] %v118
    %v120 = vld [vmem:[#allocation8] sm:$0x3]
    %v121 = vmul.f32 %v98, %v70
    %v122 = vmul.f32 %v99, %v71
    %v123 = vrot.slane %v121, 4
    %v124 = vadd.f32 %v121, %v123
    %v125 = vrot.slane %v124, 2
    %v126 = vadd.f32 %v124, %v125
    %v127 = vrot.slane %v126, 1
    %v128 = vadd.f32 %v126, %v127
    %v129 = vrot.slane %v122, 4
    %v130 = vadd.f32 %v122, %v129
    %v131 = vrot.slane %v130, 2
    %v132 = vadd.f32 %v130, %v131
    %v133 = vrot.slane %v132, 1
    %v134 = vadd.f32 %v132, %v133
    %v137 = vsel %vm115, %v134, %v128
    %v139 = vadd.f32 %v120, %v137
    %140 = vst [vmem:[#allocation8] sm:$0x3] %v139
    %v141 = vld [vmem:[#allocation10] sm:$0x3]
    %v142 = vrot.slane %v98, 4
    %v143 = vadd.f32 %v98, %v142
    %v144 = vrot.slane %v143, 2
    %v145 = vadd.f32 %v143, %v144
    %v146 = vrot.slane %v145, 1
    %v147 = vadd.f32 %v145, %v146
    %v148 = vrot.slane %v99, 4
    %v149 = vadd.f32 %v99, %v148
    %v150 = vrot.slane %v149, 2
    %v151 = vadd.f32 %v149, %v150
    %v152 = vrot.slane %v151, 1
    %v153 = vadd.f32 %v151, %v152
    %v156 = vsel %vm115, %v153, %v147
    %v158 = vadd.f32 %v141, %v156
    %159 = vst [vmem:[#allocation10] sm:$0x3] %v158
    %v160 = vld [vmem:[#allocation11] sm:$0x3]
    %v161 = vrot.slane %v70, 4
    %v162 = vadd.f32 %v70, %v161
    %v163 = vrot.slane %v162, 2
    %v164 = vadd.f32 %v162, %v163
    %v165 = vrot.slane %v164, 1
    %v166 = vadd.f32 %v164, %v165
    %v167 = vrot.slane %v71, 4
    %v168 = vadd.f32 %v71, %v167
    %v169 = vrot.slane %v168, 2
    %v170 = vadd.f32 %v168, %v169
    %v171 = vrot.slane %v170, 1
    %v172 = vadd.f32 %v170, %v171
    %v175 = vsel %vm115, %v172, %v166
    %v177 = vadd.f32 %v160, %v175
    %178 = vst [vmem:[#allocation11] sm:$0x3] %v177
    // Predicated region
    $region22: #{tpu_custom_call.1} parent=1 // pred_check
      _
    $region23: #{tpu_custom_call.1} parent=1 // pred_check_branch
      %180 = sbr.rel (0) target = $region25
    $region24: #{tpu_custom_call.1} parent=1 // pred_region
      %182 = vsyncadd [#allocation4], 0
      %s184 = sshll.u32 [#allocation7], 4
      %s185 = int_to_ptr.vmem [resolvable:$true] %s184
      %s186 = sshll.u32 %s2, 4
      %s187 = int_to_ptr.hbm [resolvable:$true] %s186
      %189 = dma.vmem_to_hbm [thread:$0]  %s185, 32, %s187, [#allocation4]
    $region25: #{tpu_custom_call.1} parent=1 // pred_fallthru
      _
    // Predicated region
    $region26: #{tpu_custom_call.1} parent=1 // pred_check
      _
    $region27: #{tpu_custom_call.1} parent=1 // pred_check_branch
      %191 = sbr.rel (0) target = $region29
    $region28: #{tpu_custom_call.1} parent=1 // pred_region
      %193 = vsyncadd [#allocation9], 0
      %s195 = sshll.u32 [#allocation8], 4
      %s196 = int_to_ptr.vmem [resolvable:$true] %s195
      %s197 = sshll.u32 %s3, 4
      %s198 = int_to_ptr.hbm [resolvable:$true] %s197
      %200 = dma.vmem_to_hbm [thread:$0]  %s196, 32, %s198, [#allocation9]
    $region29: #{tpu_custom_call.1} parent=1 // pred_fallthru
      _
    // Predicated region
    $region30: #{tpu_custom_call.1} parent=1 // pred_check
      _
    $region31: #{tpu_custom_call.1} parent=1 // pred_check_branch
      %202 = sbr.rel (0) target = $region33
    $region32: #{tpu_custom_call.1} parent=1 // pred_region
      %204 = vsyncadd [#allocation9], 0
      %s206 = sshll.u32 [#allocation10], 4
      %s207 = int_to_ptr.vmem [resolvable:$true] %s206
      %s208 = sshll.u32 %s4, 4
      %s209 = int_to_ptr.hbm [resolvable:$true] %s208
      %211 = dma.vmem_to_hbm [thread:$0]  %s207, 32, %s209, [#allocation9]
    $region33: #{tpu_custom_call.1} parent=1 // pred_fallthru
      _
    // Predicated region
    $region34: #{tpu_custom_call.1} parent=1 // pred_check
      _
    $region35: #{tpu_custom_call.1} parent=1 // pred_check_branch
      %213 = sbr.rel (0) target = $region37
    $region36: #{tpu_custom_call.1} parent=1 // pred_region
      %215 = vsyncadd [#allocation12], 0
      %s217 = sshll.u32 [#allocation11], 4
      %s218 = int_to_ptr.vmem [resolvable:$true] %s217
      %s219 = sshll.u32 %s5, 4
      %s220 = int_to_ptr.hbm [resolvable:$true] %s219
      %222 = dma.vmem_to_hbm [thread:$0]  %s218, 32, %s220, [#allocation12]
    $region37: #{tpu_custom_call.1} parent=1 // pred_fallthru
      _
    // Predicated region
    $region38: #{tpu_custom_call.1} parent=1 // pred_check
      _
    $region39: #{tpu_custom_call.1} parent=1 // pred_check_branch
      %224 = sbr.rel (0) target = $region41
    $region40: #{tpu_custom_call.1} parent=1 // pred_region
      %226 = dma.done [#allocation4], 32
    $region41: #{tpu_custom_call.1} parent=1 // pred_fallthru
      _
    // Predicated region
    $region42: #{tpu_custom_call.1} parent=1 // pred_check
      _
    $region43: #{tpu_custom_call.1} parent=1 // pred_check_branch
      %228 = sbr.rel (0) target = $region45
    $region44: #{tpu_custom_call.1} parent=1 // pred_region
      %230 = dma.done [#allocation9], 32
    $region45: #{tpu_custom_call.1} parent=1 // pred_fallthru
      _
    // Predicated region
    $region46: #{tpu_custom_call.1} parent=1 // pred_check
      _
    $region47: #{tpu_custom_call.1} parent=1 // pred_check_branch
      %232 = sbr.rel (0) target = $region49
    $region48: #{tpu_custom_call.1} parent=1 // pred_region
      %234 = dma.done [#allocation9], 32
    $region49: #{tpu_custom_call.1} parent=1 // pred_fallthru
      _
    // Predicated region
    $region50: #{tpu_custom_call.1} parent=1 // pred_check
      _
    $region51: #{tpu_custom_call.1} parent=1 // pred_check_branch
      %236 = sbr.rel (0) target = $region53
    $region52: #{tpu_custom_call.1} parent=1 // pred_region
      %238 = dma.done [#allocation12], 32
    $region53: #{tpu_custom_call.1} parent=1 // pred_fallthru
      _
    %239 = vsyncpa [#allocation3], 1
    %240 = vsyncpa [#allocation6], 1
    %241 = vsyncpa [#allocation4], 1
    %242 = vsyncpa [#allocation9], 1
    %243 = vsyncpa [#allocation12], 1

</llo_original>
